<compile_context>
chip_gen: v7x
topology: tpu7x:2x2x1
jax: 0.10.0
libtpu: 0.0.40
codegen_flags: <defaults>
</compile_context>

<pallas_src>
import math

import jax
import jax.numpy as jnp
from jax.experimental import pallas as pl
from jax.experimental.pallas import tpu as pltpu


def cenet_kernel(x_ref, wdiff_ref, bdiff_ref, o_ref):
    """One batch tile of softmax(x @ W.T + b, axis=-1) for the 2-class head."""
    x = x_ref[...]                                    # (TB, D) f32
    w = wdiff_ref[...]                                # (1, D)  f32, broadcast over rows
    b = bdiff_ref[0]                                  # scalar bias difference (SMEM)

    # Logit difference z = x·(w1 - w0) + (b1 - b0): VPU multiply + lane reduce (XLU).
    z = jnp.sum(x * w, axis=-1, keepdims=True) + b    # (TB, 1)

    # Numerically stable 2-class softmax: p1 = sigmoid(z), p0 = 1 - p1.
    e = jnp.exp(-jnp.abs(z))                          # in (0, 1]; EUP
    inv = 1.0 / (1.0 + e)
    p1 = jnp.where(z >= 0.0, inv, e * inv)            # softmax(logits)[..., 1]
    p0 = 1.0 - p1                                     # softmax(logits)[..., 0]

    o_ref[...] = jnp.concatenate([p0, p1], axis=1).astype(o_ref.dtype)


def _plan_grid(B, D, target_x_block_bytes=4 << 20):
    """Pick the batch tile TB, the grid size, and the (possibly padded) row count.

    - TB is sized from a VMEM byte budget using the *lane-padded* minor dim
      (minor dims < 128 are padded to 128 lanes in VMEM), so double-buffered
      blocks stay well inside v7x's 64 MiB VMEM.
    - The grid always has >= 2 steps so the DMA pipeline and megacore
      ("parallel") sharding are actually used.
    """
    d_pad = ((D + 127) // 128) * 128                   # VMEM lane padding of minor dim
    tb = max(128, (target_x_block_bytes // (4 * d_pad)) // 128 * 128)
    rows = max(B, 256)                                 # room for at least two 128-row tiles
    n_blocks = max(2, pl.cdiv(rows, tb))
    tb = max(128, ((pl.cdiv(rows, n_blocks) + 127) // 128) * 128)
    grid_b = pl.cdiv(rows, tb)
    return tb, grid_b, rows


def cenet_forward(x, w, b):
    """x: (B, D) f32; w: (2, D) f32 (PyTorch Linear layout); b: (2,) f32.
    Returns softmax(x @ w.T + b, axis=-1), shape (B, 2)."""
    B, D = x.shape
    # Fold the (2, D) linear layer into a single logit-difference direction.
    w_diff = (w[1, :] - w[0, :]).reshape(1, D)         # (1, D) lane-dense row
    b_diff = (b[1] - b[0]).reshape(1)                  # scalar -> SMEM

    tb, grid_b, rows = _plan_grid(B, D)

    if rows != B and B < 256:
        # Tiny batch: pad (cheap) so we still get >= 2 pipelined grid steps.
        x_in = jnp.pad(x, ((0, rows - B), (0, 0)))
    else:
        # Large batch: no pad copy; a partial last block is handled by Pallas'
        # boundary masking (OOB input rows are ignored rows, OOB writes dropped).
        x_in, rows = x, B if B >= 256 else rows

    # Double-buffered x block + out block (both lane-padded), plus slack.
    d_pad = ((D + 127) // 128) * 128
    vmem_needed = 2 * 4 * tb * (d_pad + 128) + (4 << 20)
    vmem_limit = int(min(64 << 20, max(vmem_needed, 16 << 20)))

    out = pl.pallas_call(
        cenet_kernel,
        out_shape=jax.ShapeDtypeStruct((rows, 2), jnp.float32),
        grid=(grid_b,),
        in_specs=[
            pl.BlockSpec((tb, D), lambda i: (i, 0)),            # x tiles, pipelined
            pl.BlockSpec((1, D), lambda i: (0, 0)),             # w_diff: DMA'd once, resident
            pl.BlockSpec(memory_space=pltpu.MemorySpace.SMEM),  # b_diff scalar in SMEM
        ],
        out_specs=pl.BlockSpec((tb, 2), lambda i: (i, 0)),
        compiler_params=pltpu.CompilerParams(
            dimension_semantics=("parallel",),
            vmem_limit_bytes=vmem_limit,
        ),
        cost_estimate=pl.CostEstimate(
            flops=2 * B * D + 8 * B,
            transcendentals=B,
            bytes_accessed=4 * (B * D + D + 1 + 2 * B),
        ),
    )(x_in, w_diff, b_diff)

    return out[:B] if rows != B else out


if __name__ == "__main__":
    key = jax.random.PRNGKey(0)
    kx, kw, kb = jax.random.split(key, 3)

    B, D = 8, 32                                       # batch=8, input_dim=32

    x = jax.random.normal(kx, (B, D), dtype=jnp.float32)
    # Deterministic params mimicking PyTorch Linear's uniform(-1/sqrt(D), 1/sqrt(D))
    bound = 1.0 / math.sqrt(D)
    w = jax.random.uniform(kw, (2, D), minval=-bound, maxval=bound, dtype=jnp.float32)
    b = jax.random.uniform(kb, (2,), minval=-bound, maxval=bound, dtype=jnp.float32)

    out = jax.block_until_ready(cenet_forward(x, w, b))

    # Reference check in plain JAX
    ref = jax.nn.softmax(x @ w.T + b, axis=-1)
    assert out.shape == (B, 2)
    assert jnp.allclose(out, ref, atol=1e-5, rtol=1e-5), float(jnp.max(jnp.abs(out - ref)))

    print("KERNEL_OK")
</pallas_src>

<mosaic_0001>
module attributes {stable_mosaic.version = 11 : i64} {
  func.func @cenet_kernel(%arg0: i32, %arg1: memref<128x32xf32, #tpu.memory_space<vmem>>, %arg2: memref<1x32xf32, #tpu.memory_space<vmem>>, %arg3: memref<1xf32, #tpu.memory_space<smem>>, %arg4: memref<128x2xf32, #tpu.memory_space<vmem>>) attributes {dimension_semantics = [#tpu.dimension_semantics<parallel>], iteration_bounds = array<i64: 2>, scalar_prefetch = 0 : i64, scratch_operands = 0 : i64, tpu.core_type = #tpu.core_type<tc>, window_params = [{transform_indices = @transform_0, window_bounds = array<i64: 128, 32>}, {pipeline_mode = #tpu.pipeline_mode<synchronous>, transform_indices = @transform_1, window_bounds = array<i64: 1, 32>}, {transform_indices = @transform_2, window_bounds = array<i64: 1>}, {transform_indices = @transform_3, window_bounds = array<i64: 128, 2>}]} {
    %c0 = arith.constant 0 : index
    %c0_0 = arith.constant 0 : index
    %0 = vector.load %arg1[%c0, %c0_0] : memref<128x32xf32, #tpu.memory_space<vmem>>, vector<128x32xf32>
    %c0_1 = arith.constant 0 : index
    %c0_2 = arith.constant 0 : index
    %1 = vector.load %arg2[%c0_1, %c0_2] : memref<1x32xf32, #tpu.memory_space<vmem>>, vector<1x32xf32>
    %c0_3 = arith.constant 0 : index
    %2 = memref.load %arg3[%c0_3] : memref<1xf32, #tpu.memory_space<smem>>
    %3 = vector.broadcast %1 : vector<1x32xf32> to vector<128x32xf32>
    %4 = arith.mulf %0, %3 : vector<128x32xf32>
    %cst = arith.constant dense<0.000000e+00> : vector<128xf32>
    %5 = vector.multi_reduction <add>, %4, %cst [1] : vector<128x32xf32> to vector<128xf32>
    %6 = vector.shape_cast %5 : vector<128xf32> to vector<128x1xf32>
    %7 = vector.broadcast %2 : f32 to vector<128x1xf32>
    %8 = arith.addf %6, %7 : vector<128x1xf32>
    %9 = math.absf %8 : vector<128x1xf32>
    %cst_4 = arith.constant 0.000000e+00 : f32
    %10 = vector.broadcast %cst_4 : f32 to vector<128x1xf32>
    %11 = arith.subf %10, %9 : vector<128x1xf32>
    %12 = math.exp %11 : vector<128x1xf32>
    %cst_5 = arith.constant 1.000000e+00 : f32
    %13 = vector.broadcast %cst_5 : f32 to vector<128x1xf32>
    %14 = arith.addf %13, %12 : vector<128x1xf32>
    %cst_6 = arith.constant 1.000000e+00 : f32
    %15 = vector.broadcast %cst_6 : f32 to vector<128x1xf32>
    %16 = arith.divf %15, %14 : vector<128x1xf32>
    %cst_7 = arith.constant 0.000000e+00 : f32
    %17 = vector.broadcast %cst_7 : f32 to vector<128x1xf32>
    %18 = arith.cmpf oge, %8, %17 : vector<128x1xf32>
    %19 = arith.mulf %12, %16 : vector<128x1xf32>
    %20 = arith.select %18, %16, %19 : vector<128x1xi1>, vector<128x1xf32>
    %cst_8 = arith.constant 1.000000e+00 : f32
    %21 = vector.broadcast %cst_8 : f32 to vector<128x1xf32>
    %22 = arith.subf %21, %20 : vector<128x1xf32>
    %23 = tpu.concatenate %22, %20 in 1 : vector<128x1xf32>, vector<128x1xf32> -> vector<128x2xf32>
    %c0_9 = arith.constant 0 : index
    %c0_10 = arith.constant 0 : index
    %24 = vector.load %arg4[%c0_9, %c0_10] : memref<128x2xf32, #tpu.memory_space<vmem>>, vector<128x2xf32>
    tpu.vector_store %arg4[%c0_9, %c0_10], %23 {strides = array<i32>} : memref<128x2xf32, #tpu.memory_space<vmem>>, vector<128x2xf32>,
    return
  }
  func.func @transform_0(%arg0: i32) -> (i32, i32) {
    %c0_i32 = arith.constant 0 : i32
    %c0_i32_0 = arith.constant 0 : i32
    return %arg0, %c0_i32 : i32, i32
  }
  func.func @transform_1(%arg0: i32) -> (i32, i32) {
    %c0_i32 = arith.constant 0 : i32
    %c0_i32_0 = arith.constant 0 : i32
    %c0_i32_1 = arith.constant 0 : i32
    return %c0_i32, %c0_i32_0 : i32, i32
  }
  func.func @transform_2(%arg0: i32) -> i32 {
    %c0_i32 = arith.constant 0 : i32
    %c0_i32_0 = arith.constant 0 : i32
    return %c0_i32 : i32
  }
  func.func @transform_3(%arg0: i32) -> (i32, i32) {
    %c0_i32 = arith.constant 0 : i32
    %c0_i32_0 = arith.constant 0 : i32
    return %arg0, %c0_i32 : i32, i32
  }
}

</mosaic_0001>

<llo_original>
// kernel: tpu_custom_call.1
$region0: #{tpu_custom_call.1}
  #allocation0 [shape = 'u32[]', space=smem, size = 0x4, offset = 0x4, fixed_abs, tag = 'smem constant byte address 0x4 - core index']
  #allocation1 [shape = 'u32[144,128]{1,0:T(1,128)}', space=vmem, size = 0x12000, scoped, tag = 'internal scratch']
  #allocation2 [shape = 'f32[1]{0:T(128)S(6)}', space=smem, size = 0x200, scoped, tag = 'scoped memory for tpu_custom_call.1']
  %s0 = inlined_call_operand.vmem [shape: f32[256,32], index: 0, kind: input, shape index: {}]
  %s1 = inlined_call_operand.vmem [shape: f32[1,32], index: 1, kind: input, shape index: {}]
  %s2 = inlined_call_operand.<no memory space> [shape: f32[1], index: 2, kind: input, shape index: {}]
  %s3 = inlined_call_operand.vmem [shape: f32[256,2], index: 3, kind: output, shape index: {}]
  %s4 = sld [smem:[#allocation0]]
  $region45: #{tpu_custom_call.1} parent=0
    _
  %s6 = ssub.s32 1, %s4
  %s7 = scalar_select 0, %s6, %s4
  %8 = sst [smem:[#allocation2]] %s2
  loop: start=0, step=1, limit=4
  $region2: #{tpu_custom_call.1} parent=0 // loop_pre_header
    _
  $region3: #{tpu_custom_call.1} parent=0 // loop_header
    %s10 = sphi 0, %s14
    %p11 = scmp.ge.s32.totalorder %s10, 4
    %s20 = sphi 0, %s22
    %s23 = sphi 0, %s20
    %s24 = sphi 0, %s23
    %s40 = sphi 0, %s24
    %s44 = sphi 0, %s44
    %s46 = sphi 0, %s44
    %s47 = sphi 0, %s46
    %s61 = sphi 0, %s47
    %s65 = sphi 0, %s65
    %s67 = sphi 0, %s65
    %s68 = sphi 0, %s67
    %s82 = sphi 0, %s68
    %s88 = sphi 0, %s90
    %s91 = sphi 0, %s88
    %s92 = sphi 0, %s91
    %s108 = sphi 0, %s92
  $region4: #{tpu_custom_call.1} parent=0 // loop_header_branch
    %13 = sbr.rel (%p11) target = $region8
  $region5: #{tpu_custom_call.1} parent=0 // loop_body
    %s15 = ssub.s32 %s10, 1
    %s16 = ssub.s32 %s10, 2
    %s17 = sadd.s32 %s10, 1
    %s18 = ssub.s32 %s10, %s17
    %p19 = scmp.eq.s32.totalorder %s18, 0
    %s21 = sadd.s32 %s20, 1
    %s22 = scalar_select %p19, %s20, %s21
    %p25 = pneg %p19
    %p26 = scmp.eq.s32.totalorder %s10, 1
    %p27 = por %p25, %p26
    %p28 = scmp.ne.s32.totalorder %s20, %s23
    %p29 = scmp.eq.s32.totalorder %s10, 0
    %p30 = por %p28, %p29
    %p31 = scmp.ne.s32.totalorder %s20, %s23
    %p32 = scmp.eq.s32.totalorder %s15, 1
    %p33 = por %p31, %p32
    %p34 = scmp.ne.s32.totalorder %s23, %s24
    %p35 = scmp.eq.s32.totalorder %s15, 0
    %p36 = por %p34, %p35
    %p37 = scmp.ne.s32.totalorder %s23, %s24
    %p38 = scmp.eq.s32.totalorder %s16, 1
    %p39 = por %p37, %p38
    %p41 = scmp.ne.s32.totalorder %s24, %s40
    %p42 = scmp.eq.s32.totalorder %s16, 0
    %p43 = por %p41, %p42
    %s45 = sadd.s32 %s44, 1
    %p48 = scmp.eq.s32.totalorder %s10, 1
    %p49 = scmp.ne.s32.totalorder %s44, %s46
    %p50 = scmp.eq.s32.totalorder %s10, 0
    %p51 = por %p49, %p50
    %p52 = scmp.ne.s32.totalorder %s44, %s46
    %p53 = scmp.eq.s32.totalorder %s15, 1
    %p54 = por %p52, %p53
    %p55 = scmp.ne.s32.totalorder %s46, %s47
    %p56 = scmp.eq.s32.totalorder %s15, 0
    %p57 = por %p55, %p56
    %p58 = scmp.ne.s32.totalorder %s46, %s47
    %p59 = scmp.eq.s32.totalorder %s16, 1
    %p60 = por %p58, %p59
    %p62 = scmp.ne.s32.totalorder %s47, %s61
    %p63 = scmp.eq.s32.totalorder %s16, 0
    %p64 = por %p62, %p63
    %s66 = sadd.s32 %s65, 1
    %p69 = scmp.eq.s32.totalorder %s10, 1
    %p70 = scmp.ne.s32.totalorder %s65, %s67
    %p71 = scmp.eq.s32.totalorder %s10, 0
    %p72 = por %p70, %p71
    %p73 = scmp.ne.s32.totalorder %s65, %s67
    %p74 = scmp.eq.s32.totalorder %s15, 1
    %p75 = por %p73, %p74
    %p76 = scmp.ne.s32.totalorder %s67, %s68
    %p77 = scmp.eq.s32.totalorder %s15, 0
    %p78 = por %p76, %p77
    %p79 = scmp.ne.s32.totalorder %s67, %s68
    %p80 = scmp.eq.s32.totalorder %s16, 1
    %p81 = por %p79, %p80
    %p83 = scmp.ne.s32.totalorder %s68, %s82
    %p84 = scmp.eq.s32.totalorder %s16, 0
    %p85 = por %p83, %p84
    %s86 = ssub.s32 %s10, %s17
    %p87 = scmp.eq.s32.totalorder %s86, 0
    %s89 = sadd.s32 %s88, 1
    %s90 = scalar_select %p87, %s88, %s89
    %p93 = pneg %p87
    %p94 = scmp.eq.s32.totalorder %s10, 1
    %p95 = por %p93, %p94
    %p96 = scmp.ne.s32.totalorder %s88, %s91
    %p97 = scmp.eq.s32.totalorder %s10, 0
    %p98 = por %p96, %p97
    %p99 = scmp.ne.s32.totalorder %s88, %s91
    %p100 = scmp.eq.s32.totalorder %s15, 1
    %p101 = por %p99, %p100
    %p102 = scmp.ne.s32.totalorder %s91, %s92
    %p103 = scmp.eq.s32.totalorder %s15, 0
    %p104 = por %p102, %p103
    %p105 = scmp.ne.s32.totalorder %s91, %s92
    %p106 = scmp.eq.s32.totalorder %s16, 1
    %p107 = por %p105, %p106
    %p109 = scmp.ne.s32.totalorder %s92, %s108
    %p110 = scmp.eq.s32.totalorder %s16, 0
    %p111 = por %p109, %p110
    %p112 = scmp.le.s32.totalorder 1, %s10
    %p113 = scmp.lt.s32.totalorder %s10, 3
    %p114 = pnand %p112, %p113
    %p115 = pneg %p114
    // Predicated region
    $region9: #{tpu_custom_call.1} parent=5 // pred_check
      _
    $region10: #{tpu_custom_call.1} parent=5 // pred_check_branch
      %117 = sbr.rel (%p114) target = $region12
    $region11: #{tpu_custom_call.1} parent=5 // pred_region
      %s118 = ssub.s32 %s10, 1
      // Predicated region
      $region13: #{tpu_custom_call.1} parent=11 // pred_check
        %p119 = pneg %p57
      $region14: #{tpu_custom_call.1} parent=11 // pred_check_branch
        %121 = sbr.rel (%p119) target = $region16
      $region15: #{tpu_custom_call.1} parent=11 // pred_region
        _
      $region16: #{tpu_custom_call.1} parent=11 // pred_fallthru
        _
      // Predicated region
      $region17: #{tpu_custom_call.1} parent=11 // pred_check
        %p122 = pneg %p78
      $region18: #{tpu_custom_call.1} parent=11 // pred_check_branch
        %124 = sbr.rel (%p122) target = $region20
      $region19: #{tpu_custom_call.1} parent=11 // pred_region
        _
      $region20: #{tpu_custom_call.1} parent=11 // pred_fallthru
        _
    $region12: #{tpu_custom_call.1} parent=5 // pred_fallthru
      _
    %p125 = scmp.lt.s32.totalorder %s10, 2
    // Predicated region
    $region21: #{tpu_custom_call.1} parent=5 // pred_check
      %p126 = pneg %p125
    $region22: #{tpu_custom_call.1} parent=5 // pred_check_branch
      %128 = sbr.rel (%p126) target = $region24
    $region23: #{tpu_custom_call.1} parent=5 // pred_region
      // Predicated region
      $region25: #{tpu_custom_call.1} parent=23 // pred_check
        %p129 = pneg %p30
      $region26: #{tpu_custom_call.1} parent=23 // pred_check_branch
        %131 = sbr.rel (%p129) target = $region28
      $region27: #{tpu_custom_call.1} parent=23 // pred_region
        %s132 = smul.u32 16, %s10
        %p133 = scmp.lt.s32.totalorder %s132, 31
        %s134 = scalar_select %p133, %s132, 31
        %s135 = smul.addr %s134, 8
        %s136 = scalar_lea.vmem %s0, %s135
        %s137 = smul.u32 16, %s10
      $region28: #{tpu_custom_call.1} parent=23 // pred_fallthru
        _
    $region24: #{tpu_custom_call.1} parent=5 // pred_fallthru
      _
    %p138 = scmp.le.s32.totalorder 1, %s10
    %p139 = scmp.lt.s32.totalorder %s10, 3
    %p140 = pnand %p138, %p139
    %p141 = pneg %p140
    // Predicated region
    $region29: #{tpu_custom_call.1} parent=5 // pred_check
      _
    $region30: #{tpu_custom_call.1} parent=5 // pred_check_branch
      %143 = sbr.rel (%p140) target = $region32
    $region31: #{tpu_custom_call.1} parent=5 // pred_region
      %s144 = ssub.s32 %s10, 1
      %s145 = smul.u32 16, %s15
      %p146 = scmp.lt.s32.totalorder %s145, 31
      %s147 = scalar_select %p146, %s145, 31
      %s148 = smul.addr %s147, 8
      %s149 = scalar_lea.vmem %s0, %s148
      %p150 = pneg %p36
      %p151 = pneg %p33
      %p152 = pneg %p57
      %p153 = pneg %p54
      %p154 = pneg %p78
      %p155 = pneg %p75
      %p156 = pneg %p104
      %p157 = pneg %p101
      %s158 = smul.u32 16, %s15
      %p159 = scmp.lt.s32.totalorder %s158, 31
      %s160 = scalar_select %p159, %s158, 31
      %s161 = smul.addr %s160, 8
      %s162 = scalar_lea.vmem %s3, %s161
      %s163 = smul.u32 16, %s15
      %p164 = scmp.lt.s32.totalorder %s163, 31
      %s165 = scalar_select %p164, %s163, 31
      %s166 = smul.addr %s165, 8
      %s167 = scalar_lea.vmem %s0, %s166
      %s168 = smul.u32 16, %s15
      %s169 = smul.u32 16, %s15
      %p170 = scmp.lt.s32.totalorder %s169, 31
      %s171 = scalar_select %p170, %s169, 31
      %s172 = smul.addr %s171, 8
      %s173 = scalar_lea.vmem %s3, %s172
      %s174 = smul.u32 16, %s15
      %v175 = vld [vmem:[%s167] sm:$0xff]
      %v176 = vld [vmem:[%s167 + $0x8] sm:$0xff]
      %v177 = vld [vmem:[%s167 + $0x10] sm:$0xff]
      %v178 = vld [vmem:[%s167 + $0x18] sm:$0xff]
      %v179 = vld [vmem:[%s167 + $0x20] sm:$0xff]
      %v180 = vld [vmem:[%s167 + $0x28] sm:$0xff]
      %v181 = vld [vmem:[%s167 + $0x30] sm:$0xff]
      %v182 = vld [vmem:[%s167 + $0x38] sm:$0xff]
      %v183 = vld [vmem:[%s167 + $0x40] sm:$0xff]
      %v184 = vld [vmem:[%s167 + $0x48] sm:$0xff]
      %v185 = vld [vmem:[%s167 + $0x50] sm:$0xff]
      %v186 = vld [vmem:[%s167 + $0x58] sm:$0xff]
      %v187 = vld [vmem:[%s167 + $0x60] sm:$0xff]
      %v188 = vld [vmem:[%s167 + $0x68] sm:$0xff]
      %v189 = vld [vmem:[%s167 + $0x70] sm:$0xff]
      %v190 = vld [vmem:[%s167 + $0x78] sm:$0xff]
      %v191 = vld [vmem:[%s1] sm:$0x1]
      %s192 = sld [smem:[#allocation2]]
      %v194 = vlaneseq
      %v195 = vshrl.u32 %v194, 7
      %v196 = vsub.s32 0, %v195
      %v197 = vrot.slane %v191, %v196
      %v199 = vmul.f32 %v175, %v197
      %v200 = vmul.f32 %v176, %v197
      %v201 = vmul.f32 %v177, %v197
      %v202 = vmul.f32 %v178, %v197
      %v203 = vmul.f32 %v179, %v197
      %v204 = vmul.f32 %v180, %v197
      %v205 = vmul.f32 %v181, %v197
      %v206 = vmul.f32 %v182, %v197
      %v207 = vmul.f32 %v183, %v197
      %v208 = vmul.f32 %v184, %v197
      %v209 = vmul.f32 %v185, %v197
      %v210 = vmul.f32 %v186, %v197
      %v211 = vmul.f32 %v187, %v197
      %v212 = vmul.f32 %v188, %v197
      %v213 = vmul.f32 %v189, %v197
      %v214 = vmul.f32 %v190, %v197
      %vm215 = vcmask 261120
      %v216 = vsel %vm215, %v199, 0.0
      %217 = vadd.xlane.f32.xlu0 %v216
      %v218 = vpop.xlane.xlu0 %217
      %v219 = vsel %vm215, %v200, 0.0
      %220 = vadd.xlane.f32.xlu0 %v219
      %v221 = vpop.xlane.xlu0 %220
      %v222 = vsel %vm215, %v201, 0.0
      %223 = vadd.xlane.f32.xlu0 %v222
      %v224 = vpop.xlane.xlu0 %223
      %v225 = vsel %vm215, %v202, 0.0
      %226 = vadd.xlane.f32.xlu0 %v225
      %v227 = vpop.xlane.xlu0 %226
      %v228 = vsel %vm215, %v203, 0.0
      %229 = vadd.xlane.f32.xlu0 %v228
      %v230 = vpop.xlane.xlu0 %229
      %v231 = vsel %vm215, %v204, 0.0
      %232 = vadd.xlane.f32.xlu0 %v231
      %v233 = vpop.xlane.xlu0 %232
      %v234 = vsel %vm215, %v205, 0.0
      %235 = vadd.xlane.f32.xlu0 %v234
      %v236 = vpop.xlane.xlu0 %235
      %v237 = vsel %vm215, %v206, 0.0
      %238 = vadd.xlane.f32.xlu0 %v237
      %v239 = vpop.xlane.xlu0 %238
      %v240 = vsel %vm215, %v207, 0.0
      %241 = vadd.xlane.f32.xlu0 %v240
      %v242 = vpop.xlane.xlu0 %241
      %v243 = vsel %vm215, %v208, 0.0
      %244 = vadd.xlane.f32.xlu0 %v243
      %v245 = vpop.xlane.xlu0 %244
      %v246 = vsel %vm215, %v209, 0.0
      %247 = vadd.xlane.f32.xlu0 %v246
      %v248 = vpop.xlane.xlu0 %247
      %v249 = vsel %vm215, %v210, 0.0
      %250 = vadd.xlane.f32.xlu0 %v249
      %v251 = vpop.xlane.xlu0 %250
      %v252 = vsel %vm215, %v211, 0.0
      %253 = vadd.xlane.f32.xlu0 %v252
      %v254 = vpop.xlane.xlu0 %253
      %v255 = vsel %vm215, %v212, 0.0
      %256 = vadd.xlane.f32.xlu0 %v255
      %v257 = vpop.xlane.xlu0 %256
      %v258 = vsel %vm215, %v213, 0.0
      %259 = vadd.xlane.f32.xlu0 %v258
      %v260 = vpop.xlane.xlu0 %259
      %v261 = vsel %vm215, %v214, 0.0
      %262 = vadd.xlane.f32.xlu0 %v261
      %v263 = vpop.xlane.xlu0 %262
      %v264 = vstv %s192
      %v265 = vadd.f32 %v218, %v264
      %v266 = vadd.f32 %v221, %v264
      %v267 = vadd.f32 %v224, %v264
      %v268 = vadd.f32 %v227, %v264
      %v269 = vadd.f32 %v230, %v264
      %v270 = vadd.f32 %v233, %v264
      %v271 = vadd.f32 %v236, %v264
      %v272 = vadd.f32 %v239, %v264
      %v273 = vadd.f32 %v242, %v264
      %v274 = vadd.f32 %v245, %v264
      %v275 = vadd.f32 %v248, %v264
      %v276 = vadd.f32 %v251, %v264
      %v277 = vadd.f32 %v254, %v264
      %v278 = vadd.f32 %v257, %v264
      %v279 = vadd.f32 %v260, %v264
      %v280 = vadd.f32 %v263, %v264
      %v281 = vand.u32 2147483647, %v265
      %v282 = vand.u32 2147483647, %v266
      %v283 = vand.u32 2147483647, %v267
      %v284 = vand.u32 2147483647, %v268
      %v285 = vand.u32 2147483647, %v269
      %v286 = vand.u32 2147483647, %v270
      %v287 = vand.u32 2147483647, %v271
      %v288 = vand.u32 2147483647, %v272
      %v289 = vand.u32 2147483647, %v273
      %v290 = vand.u32 2147483647, %v274
      %v291 = vand.u32 2147483647, %v275
      %v292 = vand.u32 2147483647, %v276
      %v293 = vand.u32 2147483647, %v277
      %v294 = vand.u32 2147483647, %v278
      %v295 = vand.u32 2147483647, %v279
      %v296 = vand.u32 2147483647, %v280
      %v297 = vsub.f32 0.0, %v281
      %v298 = vsub.f32 0.0, %v282
      %v299 = vsub.f32 0.0, %v283
      %v300 = vsub.f32 0.0, %v284
      %v301 = vsub.f32 0.0, %v285
      %v302 = vsub.f32 0.0, %v286
      %v303 = vsub.f32 0.0, %v287
      %v304 = vsub.f32 0.0, %v288
      %v305 = vsub.f32 0.0, %v289
      %v306 = vsub.f32 0.0, %v290
      %v307 = vsub.f32 0.0, %v291
      %v308 = vsub.f32 0.0, %v292
      %v309 = vsub.f32 0.0, %v293
      %v310 = vsub.f32 0.0, %v294
      %v311 = vsub.f32 0.0, %v295
      %v312 = vsub.f32 0.0, %v296
      %v313 = vmul.f32 %v297, 1.442695
      %v314 = vpow.pop %v313
      %v315 = vmul.f32 %v298, 1.442695
      %v316 = vpow.pop %v315
      %v317 = vmul.f32 %v299, 1.442695
      %v318 = vpow.pop %v317
      %v319 = vmul.f32 %v300, 1.442695
      %v320 = vpow.pop %v319
      %v321 = vmul.f32 %v301, 1.442695
      %v322 = vpow.pop %v321
      %v323 = vmul.f32 %v302, 1.442695
      %v324 = vpow.pop %v323
      %v325 = vmul.f32 %v303, 1.442695
      %v326 = vpow.pop %v325
      %v327 = vmul.f32 %v304, 1.442695
      %v328 = vpow.pop %v327
      %v329 = vmul.f32 %v305, 1.442695
      %v330 = vpow.pop %v329
      %v331 = vmul.f32 %v306, 1.442695
      %v332 = vpow.pop %v331
      %v333 = vmul.f32 %v307, 1.442695
      %v334 = vpow.pop %v333
      %v335 = vmul.f32 %v308, 1.442695
      %v336 = vpow.pop %v335
      %v337 = vmul.f32 %v309, 1.442695
      %v338 = vpow.pop %v337
      %v339 = vmul.f32 %v310, 1.442695
      %v340 = vpow.pop %v339
      %v341 = vmul.f32 %v311, 1.442695
      %v342 = vpow.pop %v341
      %v343 = vmul.f32 %v312, 1.442695
      %v344 = vpow.pop %v343
      %v345 = vadd.f32 %v314, 1.0
      %v346 = vadd.f32 %v316, 1.0
      %v347 = vadd.f32 %v318, 1.0
      %v348 = vadd.f32 %v320, 1.0
      %v349 = vadd.f32 %v322, 1.0
      %v350 = vadd.f32 %v324, 1.0
      %v351 = vadd.f32 %v326, 1.0
      %v352 = vadd.f32 %v328, 1.0
      %v353 = vadd.f32 %v330, 1.0
      %v354 = vadd.f32 %v332, 1.0
      %v355 = vadd.f32 %v334, 1.0
      %v356 = vadd.f32 %v336, 1.0
      %v357 = vadd.f32 %v338, 1.0
      %v358 = vadd.f32 %v340, 1.0
      %v359 = vadd.f32 %v342, 1.0
      %v360 = vadd.f32 %v344, 1.0
      %v361 = vrcp.pop %v345
      %v362 = vmul.f32 1.0, %v361
      %v363 = vrcp.pop %v346
      %v364 = vmul.f32 1.0, %v363
      %v365 = vrcp.pop %v347
      %v366 = vmul.f32 1.0, %v365
      %v367 = vrcp.pop %v348
      %v368 = vmul.f32 1.0, %v367
      %v369 = vrcp.pop %v349
      %v370 = vmul.f32 1.0, %v369
      %v371 = vrcp.pop %v350
      %v372 = vmul.f32 1.0, %v371
      %v373 = vrcp.pop %v351
      %v374 = vmul.f32 1.0, %v373
      %v375 = vrcp.pop %v352
      %v376 = vmul.f32 1.0, %v375
      %v377 = vrcp.pop %v353
      %v378 = vmul.f32 1.0, %v377
      %v379 = vrcp.pop %v354
      %v380 = vmul.f32 1.0, %v379
      %v381 = vrcp.pop %v355
      %v382 = vmul.f32 1.0, %v381
      %v383 = vrcp.pop %v356
      %v384 = vmul.f32 1.0, %v383
      %v385 = vrcp.pop %v357
      %v386 = vmul.f32 1.0, %v385
      %v387 = vrcp.pop %v358
      %v388 = vmul.f32 1.0, %v387
      %v389 = vrcp.pop %v359
      %v390 = vmul.f32 1.0, %v389
      %v391 = vrcp.pop %v360
      %v392 = vmul.f32 1.0, %v391
      %vm393 = vcmp.ge.f32.partialorder %v265, 0.0
      %vm394 = vcmp.ge.f32.partialorder %v266, 0.0
      %vm395 = vcmp.ge.f32.partialorder %v267, 0.0
      %vm396 = vcmp.ge.f32.partialorder %v268, 0.0
      %vm397 = vcmp.ge.f32.partialorder %v269, 0.0
      %vm398 = vcmp.ge.f32.partialorder %v270, 0.0
      %vm399 = vcmp.ge.f32.partialorder %v271, 0.0
      %vm400 = vcmp.ge.f32.partialorder %v272, 0.0
      %vm401 = vcmp.ge.f32.partialorder %v273, 0.0
      %vm402 = vcmp.ge.f32.partialorder %v274, 0.0
      %vm403 = vcmp.ge.f32.partialorder %v275, 0.0
      %vm404 = vcmp.ge.f32.partialorder %v276, 0.0
      %vm405 = vcmp.ge.f32.partialorder %v277, 0.0
      %vm406 = vcmp.ge.f32.partialorder %v278, 0.0
      %vm407 = vcmp.ge.f32.partialorder %v279, 0.0
      %vm408 = vcmp.ge.f32.partialorder %v280, 0.0
      %v409 = vmul.f32 %v314, %v362
      %v410 = vmul.f32 %v316, %v364
      %v411 = vmul.f32 %v318, %v366
      %v412 = vmul.f32 %v320, %v368
      %v413 = vmul.f32 %v322, %v370
      %v414 = vmul.f32 %v324, %v372
      %v415 = vmul.f32 %v326, %v374
      %v416 = vmul.f32 %v328, %v376
      %v417 = vmul.f32 %v330, %v378
      %v418 = vmul.f32 %v332, %v380
      %v419 = vmul.f32 %v334, %v382
      %v420 = vmul.f32 %v336, %v384
      %v421 = vmul.f32 %v338, %v386
      %v422 = vmul.f32 %v340, %v388
      %v423 = vmul.f32 %v342, %v390
      %v424 = vmul.f32 %v344, %v392
      %v425 = vsel %vm393, %v362, %v409
      %v426 = vsel %vm394, %v364, %v410
      %v427 = vsel %vm395, %v366, %v411
      %v428 = vsel %vm396, %v368, %v412
      %v429 = vsel %vm397, %v370, %v413
      %v430 = vsel %vm398, %v372, %v414
      %v431 = vsel %vm399, %v374, %v415
      %v432 = vsel %vm400, %v376, %v416
      %v433 = vsel %vm401, %v378, %v417
      %v434 = vsel %vm402, %v380, %v418
      %v435 = vsel %vm403, %v382, %v419
      %v436 = vsel %vm404, %v384, %v420
      %v437 = vsel %vm405, %v386, %v421
      %v438 = vsel %vm406, %v388, %v422
      %v439 = vsel %vm407, %v390, %v423
      %v440 = vsel %vm408, %v392, %v424
      %v441 = vsub.f32 1.0, %v425
      %v442 = vsub.f32 1.0, %v426
      %v443 = vsub.f32 1.0, %v427
      %v444 = vsub.f32 1.0, %v428
      %v445 = vsub.f32 1.0, %v429
      %v446 = vsub.f32 1.0, %v430
      %v447 = vsub.f32 1.0, %v431
      %v448 = vsub.f32 1.0, %v432
      %v449 = vsub.f32 1.0, %v433
      %v450 = vsub.f32 1.0, %v434
      %v451 = vsub.f32 1.0, %v435
      %v452 = vsub.f32 1.0, %v436
      %v453 = vsub.f32 1.0, %v437
      %v454 = vsub.f32 1.0, %v438
      %v455 = vsub.f32 1.0, %v439
      %v456 = vsub.f32 1.0, %v440
      %vm457 = vcmask 7168
      %v458 = vsel %vm457, %v441, %v425
      %v459 = vsel %vm457, %v442, %v426
      %v460 = vsel %vm457, %v443, %v427
      %v461 = vsel %vm457, %v444, %v428
      %v462 = vsel %vm457, %v445, %v429
      %v463 = vsel %vm457, %v446, %v430
      %v464 = vsel %vm457, %v447, %v431
      %v465 = vsel %vm457, %v448, %v432
      %v466 = vsel %vm457, %v449, %v433
      %v467 = vsel %vm457, %v450, %v434
      %v468 = vsel %vm457, %v451, %v435
      %v469 = vsel %vm457, %v452, %v436
      %v470 = vsel %vm457, %v453, %v437
      %v471 = vsel %vm457, %v454, %v438
      %v472 = vsel %vm457, %v455, %v439
      %v473 = vsel %vm457, %v456, %v440
      %vm474 = vcmask 15360
      %475 = vst.msk [vmem:[%s173] sm:$0xff] %vm474, %v458
      %476 = vst.msk [vmem:[%s173 + $0x8] sm:$0xff] %vm474, %v459
      %477 = vst.msk [vmem:[%s173 + $0x10] sm:$0xff] %vm474, %v460
      %478 = vst.msk [vmem:[%s173 + $0x18] sm:$0xff] %vm474, %v461
      %479 = vst.msk [vmem:[%s173 + $0x20] sm:$0xff] %vm474, %v462
      %480 = vst.msk [vmem:[%s173 + $0x28] sm:$0xff] %vm474, %v463
      %481 = vst.msk [vmem:[%s173 + $0x30] sm:$0xff] %vm474, %v464
      %482 = vst.msk [vmem:[%s173 + $0x38] sm:$0xff] %vm474, %v465
      %483 = vst.msk [vmem:[%s173 + $0x40] sm:$0xff] %vm474, %v466
      %484 = vst.msk [vmem:[%s173 + $0x48] sm:$0xff] %vm474, %v467
      %485 = vst.msk [vmem:[%s173 + $0x50] sm:$0xff] %vm474, %v468
      %486 = vst.msk [vmem:[%s173 + $0x58] sm:$0xff] %vm474, %v469
      %487 = vst.msk [vmem:[%s173 + $0x60] sm:$0xff] %vm474, %v470
      %488 = vst.msk [vmem:[%s173 + $0x68] sm:$0xff] %vm474, %v471
      %489 = vst.msk [vmem:[%s173 + $0x70] sm:$0xff] %vm474, %v472
      %490 = vst.msk [vmem:[%s173 + $0x78] sm:$0xff] %vm474, %v473
      %s491 = smul.u32 16, %s15
      %p492 = scmp.lt.s32.totalorder %s491, 31
      %s493 = scalar_select %p492, %s491, 31
      %s494 = smul.addr %s493, 8
      %s495 = scalar_lea.vmem %s3, %s494
      // Predicated region
      $region33: #{tpu_custom_call.1} parent=31 // pred_check
        %p496 = pneg %p101
      $region34: #{tpu_custom_call.1} parent=31 // pred_check_branch
        %498 = sbr.rel (%p496) target = $region36
      $region35: #{tpu_custom_call.1} parent=31 // pred_region
        %s499 = smul.u32 16, %s15
      $region36: #{tpu_custom_call.1} parent=31 // pred_fallthru
        _
    $region32: #{tpu_custom_call.1} parent=5 // pred_fallthru
      _
    %p500 = scmp.le.s32.totalorder 2, %s10
    // Predicated region
    $region37: #{tpu_custom_call.1} parent=5 // pred_check
      %p501 = pneg %p500
    $region38: #{tpu_custom_call.1} parent=5 // pred_check_branch
      %503 = sbr.rel (%p501) target = $region40
    $region39: #{tpu_custom_call.1} parent=5 // pred_region
      %s504 = ssub.s32 %s10, 2
      // Predicated region
      $region41: #{tpu_custom_call.1} parent=39 // pred_check
        %p505 = pneg %p107
      $region42: #{tpu_custom_call.1} parent=39 // pred_check_branch
        %507 = sbr.rel (%p505) target = $region44
      $region43: #{tpu_custom_call.1} parent=39 // pred_region
        %s508 = smul.u32 16, %s16
        %p509 = scmp.lt.s32.totalorder %s508, 31
        %s510 = scalar_select %p509, %s508, 31
        %s511 = smul.addr %s510, 8
        %s512 = scalar_lea.vmem %s3, %s511
      $region44: #{tpu_custom_call.1} parent=39 // pred_fallthru
        _
    $region40: #{tpu_custom_call.1} parent=5 // pred_fallthru
      _
  $region6: #{tpu_custom_call.1} parent=0 // loop_footer
    %s14 = sadd.s32 1, %s10
  $region7: #{tpu_custom_call.1} parent=0 // loop_footer_branch
    %9 = sbr.rel target = $region3
  $region8: #{tpu_custom_call.1} parent=0 // loop_exit
    _

</llo_original>
